<compile_context>
chip_gen: v6e
topology: v6e:2x2x1
jax: 0.10.0
libtpu: 0.0.40
codegen_flags: <defaults>
</compile_context>

<pallas_src>
import functools

import jax
import jax.numpy as jnp
from jax.experimental import pallas as pl
from jax.experimental.pallas import tpu as pltpu

_LANE = 128
_SUBLANE = 8
# ~8 MiB input blocks: mem-bound tilings reach ~85%+ of HBM roofline at 4-8 MiB,
# and on v7x (3.2 TB/s) smaller blocks leave the ~0.35us/step overhead exposed.
_TARGET_BLOCK_BYTES = 8 << 20
# Don't shrink blocks below this when splitting rows for megacore parallelism.
_MIN_BLOCK_BYTES = 1 << 20
# Aim for this many row blocks so v7x's two TensorCores both get work.
_PARALLEL_ROW_BLOCKS = 4
# Never request more scoped VMEM than this (v7x physical VMEM is 64 MiB).
_MAX_VMEM_LIMIT = 48 << 20


def _round_up(x, m):
    return (x + m - 1) // m * m


def _gap_kernel(*refs, use_dot, single_pass, mask_remainder, inv_hw, lanes, hw_chunk):
    """Reduce the lane (spatial) axis of one (bm, hw_chunk) tile, scale by 1/HW."""
    it = iter(refs)
    x_ref = next(it)
    ones_ref = next(it) if use_dot else None
    o_ref = next(it)
    acc_ref = None if single_pass else next(it)

    x = x_ref[...]
    if mask_remainder:
        # Last reduction chunk runs past the end of the array; zero the
        # out-of-range lanes before reducing (OOB block contents are undefined).
        j = pl.program_id(1)
        lane_ix = jax.lax.broadcasted_iota(jnp.int32, x.shape, x.ndim - 1)
        x = jnp.where(lane_ix + j * hw_chunk < lanes, x, jnp.zeros_like(x))

    if use_dot:
        # Segmented sum on the (otherwise idle) MXU: x is (bm, k*hw) bf16, the
        # ones matrix is a (k*hw, k) block-diagonal -> (bm, k) f32.  Exact for
        # bf16 and keeps both the load and the store lane dense for tiny HW.
        part = jnp.dot(x, ones_ref[...], preferred_element_type=jnp.float32)
    else:
        # Lane-axis sum with f32 accumulation.
        # NOTE(v7x audit): if a bundle dump shows the XLU slot binding for
        # mid-sized HW, fold to 128 lanes with VPU adds and do the final
        # 128->1 collapse on the MXU instead.
        part = jnp.sum(x.astype(jnp.float32), axis=-1, keepdims=True)

    if single_pass:
        o_ref[...] = (part * inv_hw).astype(o_ref.dtype)
    else:
        j = pl.program_id(1)

        @pl.when(j == 0)
        def _init():
            acc_ref[...] = jnp.zeros_like(acc_ref)

        acc_ref[...] += part

        @pl.when(j == pl.num_programs(1) - 1)
        def _finalize():
            o_ref[...] = (acc_ref[...] * inv_hw).astype(o_ref.dtype)


def _gap_2d(flat):
    """flat: [R, HW] -> [R//k, k] per-segment means (k pooled rows packed per block row)."""
    r, hw = flat.shape
    dtype = flat.dtype
    itemsize = dtype.itemsize

    # ---- Small-HW packing (bf16 only, where the MXU segmented sum is exact):
    # fold k consecutive pooled rows into one >=128-lane block row so loads and
    # the (bm, k) store stay lane dense instead of padding HW up to 128.
    k = 1
    if hw < _LANE and r > 1 and dtype == jnp.bfloat16:
        k_target = min(pl.cdiv(_LANE, hw), r)
        for cand in range(k_target, 1, -1):
            if r % cand == 0:        # keeps the HBM reshape free (contiguous rows)
                k = cand
                break
    use_dot = k > 1
    rp = r // k
    lanes = k * hw
    packed = flat.reshape(rp, lanes) if k > 1 else flat

    # ---- Chunk the reduction axis for very large HW so even the 8-row floor
    # block (plus its f32 cast / mask temporaries) stays well inside scoped VMEM.
    widened = 4  # size everything for the f32 accumulation footprint
    if use_dot:
        hw_chunk = lanes
    else:
        max_chunk = max(
            _LANE,
            ((_TARGET_BLOCK_BYTES // 2) // (_SUBLANE * widened)) // _LANE * _LANE)
        hw_chunk = lanes if lanes <= max_chunk else max_chunk
    num_hw = pl.cdiv(lanes, hw_chunk)
    single_pass = num_hw == 1
    mask_remainder = (not single_pass) and (lanes % hw_chunk != 0)

    # ---- Row-block size from the lane-padded, f32-widened footprint.
    row_bytes = _round_up(hw_chunk, _LANE) * widened
    bm = max(_SUBLANE, (_TARGET_BLOCK_BYTES // row_bytes) // _SUBLANE * _SUBLANE)
    if bm >= rp:
        bm = rp
    if rp > _SUBLANE:
        # Prefer >= _PARALLEL_ROW_BLOCKS row blocks (megacore + pipeline overlap)
        # as long as each block stays >= _MIN_BLOCK_BYTES.
        cand = max(_SUBLANE, _round_up(pl.cdiv(rp, _PARALLEL_ROW_BLOCKS), _SUBLANE))
        if cand < bm and cand * row_bytes >= _MIN_BLOCK_BYTES:
            bm = cand
    num_rows = pl.cdiv(rp, bm)

    # ---- Inputs & specs.
    inputs = [packed]
    # NOTE(v7x sweep): pipeline_mode=pl.Buffered(3) on this spec is worth a try
    # if a trace shows exposed DMA startup between steps; revert if VMEM-bound.
    in_specs = [pl.BlockSpec((bm, hw_chunk), lambda i, j: (i, j))]
    if use_dot:
        seg = (jnp.arange(lanes, dtype=jnp.int32)[:, None] // hw) == \
              jnp.arange(k, dtype=jnp.int32)[None, :]
        inputs.append(seg.astype(dtype))                     # (k*hw, k) block-diag ones
        in_specs.append(pl.BlockSpec((lanes, k), lambda i, j: (0, 0)))

    out_spec = pl.BlockSpec((bm, k), lambda i, j: (i, 0))
    scratch_shapes = [] if single_pass else [pltpu.VMEM((bm, k), jnp.float32)]

    # ---- Scoped-VMEM budget: double-buffered input (+ ones), one block worth of
    # f32 cast / mask temporaries, tiny output/scratch, plus headroom.  Clamped
    # to [32 MiB, 48 MiB]: raises v5e's 16 MiB default, never lowers v6e/v7x's
    # 32 MiB default, stays well under v7x's 64 MiB physical VMEM.
    in_block = bm * _round_up(hw_chunk, _LANE) * itemsize
    f32_block = bm * _round_up(hw_chunk, _LANE) * 4
    ones_bytes = (_round_up(lanes, _SUBLANE) * _LANE * itemsize) if use_dot else 0
    small = _round_up(bm, _SUBLANE) * _LANE * (itemsize + 4)
    needed = 2 * (in_block + ones_bytes) + 2 * f32_block + small + (4 << 20)
    vmem_limit = int(min(max(needed, 32 << 20), _MAX_VMEM_LIMIT))

    kernel = functools.partial(
        _gap_kernel,
        use_dot=use_dot, single_pass=single_pass, mask_remainder=mask_remainder,
        inv_hw=1.0 / float(hw), lanes=lanes, hw_chunk=hw_chunk)

    return pl.pallas_call(
        kernel,
        out_shape=jax.ShapeDtypeStruct((rp, k), dtype),
        grid=(num_rows, num_hw),
        in_specs=in_specs,
        out_specs=out_spec,
        scratch_shapes=scratch_shapes,
        compiler_params=pltpu.CompilerParams(
            dimension_semantics=("parallel", "arbitrary"),
            vmem_limit_bytes=vmem_limit),
        cost_estimate=pl.CostEstimate(
            flops=2 * r * hw,
            transcendentals=0,
            bytes_accessed=r * hw * itemsize + r * itemsize),
    )(*inputs)


def gap_forward(x):
    """Pallas GAP.forward: [N,C,H,W] -> [N,C] or [N,T,C,H,W] -> [N,T,C]."""
    if x.ndim == 5:
        # The reference 5-D branch computes the pooled tensor but returns an
        # undefined name (NameError); we implement the intended behaviour.
        n, t, c, h, w = x.shape
        return _gap_2d(x.reshape(n * t * c, h * w)).reshape(n, t, c)
    if x.ndim == 4:
        n, c, h, w = x.shape
        return _gap_2d(x.reshape(n * c, h * w)).reshape(n, c)
    raise ValueError(f"GAP expects a 4-D or 5-D input, got shape {x.shape}")


if __name__ == "__main__":
    # 1) 4-D f32, lane-wide spatial (single-pass lane-sum path).
    x4 = jax.random.normal(jax.random.PRNGKey(0), (2, 4, 16, 16), dtype=jnp.float32)
    out4 = jax.block_until_ready(gap_forward(x4))
    ref4 = jnp.mean(x4, axis=(2, 3))
    assert out4.shape == (2, 4) and out4.dtype == x4.dtype
    assert bool(jnp.allclose(out4, ref4, atol=1e-5, rtol=1e-5))

    # 2) 5-D bf16 with small spatial (packed lane-dense MXU path; intended
    #    [N,T,C] semantics of the buggy reference branch).
    x5 = jax.random.normal(jax.random.PRNGKey(1), (2, 3, 4, 8, 8), dtype=jnp.bfloat16)
    out5 = jax.block_until_ready(gap_forward(x5))
    ref5 = jnp.mean(x5.astype(jnp.float32), axis=(3, 4)).astype(jnp.bfloat16)
    assert out5.shape == (2, 3, 4) and out5.dtype == x5.dtype
    assert bool(jnp.allclose(out5.astype(jnp.float32), ref5.astype(jnp.float32),
                             atol=2e-2, rtol=2e-2))

    # 3) 4-D f32 with large spatial (chunked reduction axis + remainder masking
    #    + f32 scratch accumulation).
    x6 = jax.random.normal(jax.random.PRNGKey(2), (1, 2, 608, 608), dtype=jnp.float32)
    out6 = jax.block_until_ready(gap_forward(x6))
    ref6 = jnp.mean(x6, axis=(2, 3))
    assert out6.shape == (1, 2) and out6.dtype == x6.dtype
    assert bool(jnp.allclose(out6, ref6, atol=1e-5, rtol=1e-5))

    print("KERNEL_OK")
</pallas_src>

<mosaic_0001>
module attributes {stable_mosaic.version = 11 : i64} {
  func.func @_gap_kernel(%arg0: i32, %arg1: i32, %arg2: memref<8x256xf32, #tpu.memory_space<vmem>>, %arg3: memref<8x1xf32, #tpu.memory_space<vmem>>) attributes {dimension_semantics = [#tpu.dimension_semantics<parallel>, #tpu.dimension_semantics<arbitrary>], iteration_bounds = array<i64: 1, 1>, scalar_prefetch = 0 : i64, scratch_operands = 0 : i64, tpu.core_type = #tpu.core_type<tc>, window_params = [{transform_indices = @transform_0, window_bounds = array<i64: 8, 256>}, {transform_indices = @transform_1, window_bounds = array<i64: 8, 1>}]} {
    %c0 = arith.constant 0 : index
    %c0_0 = arith.constant 0 : index
    %0 = vector.load %arg2[%c0, %c0_0] : memref<8x256xf32, #tpu.memory_space<vmem>>, vector<8x256xf32>
    %cst = arith.constant dense<0.000000e+00> : vector<8xf32>
    %1 = vector.multi_reduction <add>, %0, %cst [1] : vector<8x256xf32> to vector<8xf32>
    %2 = vector.shape_cast %1 : vector<8xf32> to vector<8x1xf32>
    %cst_1 = arith.constant 3.906250e-03 : f32
    %3 = vector.broadcast %cst_1 : f32 to vector<8x1xf32>
    %4 = arith.mulf %2, %3 : vector<8x1xf32>
    %c0_2 = arith.constant 0 : index
    %c0_3 = arith.constant 0 : index
    %5 = vector.load %arg3[%c0_2, %c0_3] : memref<8x1xf32, #tpu.memory_space<vmem>>, vector<8x1xf32>
    tpu.vector_store %arg3[%c0_2, %c0_3], %4 {strides = array<i32>} : memref<8x1xf32, #tpu.memory_space<vmem>>, vector<8x1xf32>,
    return
  }
  func.func @transform_0(%arg0: i32, %arg1: i32) -> (i32, i32) {
    %c0_i32 = arith.constant 0 : i32
    return %arg0, %arg1 : i32, i32
  }
  func.func @transform_1(%arg0: i32, %arg1: i32) -> (i32, i32) {
    %c0_i32 = arith.constant 0 : i32
    %c0_i32_0 = arith.constant 0 : i32
    return %arg0, %c0_i32 : i32, i32
  }
}

</mosaic_0001>

<llo_original>
// kernel: tpu_custom_call.1
$region0: #{tpu_custom_call.1}
  #allocation0 [shape = 'u32[]', space=smem, size = 0x4, offset = 0x4, fixed_abs, tag = 'smem constant byte address 0x4 - core index']
  #allocation1 [shape = 'u32[144,128]{1,0:T(1,128)}', space=vmem, size = 0x12000, scoped, tag = 'internal scratch']
  %s0 = inlined_call_operand.hbm [shape: f32[8,256], index: 0, kind: input, shape index: {}]
  %s1 = inlined_call_operand.vmem [shape: f32[8,1], index: 1, kind: output, shape index: {}]
  %s2 = sld [smem:[#allocation0]]
  $region18: #{tpu_custom_call.1} parent=0
    _
  %s4 = ssub.s32 1, %s2
  %s5 = scalar_select 0, %s4, %s2
  $region1: #{tpu_custom_call.1} parent=0
    #allocation2 [shape = 'u8[8192]{0}', space=vmem, size = 0x2000, scoped, tag = 'input window, operand 0, single buffered']
    #allocation3 [shape = 's32[1]{0}', space=sflag, size = 0x4, scoped, tag = 'scoped memory for tpu_custom_call.1']
    %6 = vsyncpa [#allocation3], 0
    // Predicated region
    $region2: #{tpu_custom_call.1} parent=1 // pred_check
      _
    $region3: #{tpu_custom_call.1} parent=1 // pred_check_branch
      %8 = sbr.rel (0) target = $region5
    $region4: #{tpu_custom_call.1} parent=1 // pred_region
      %s10 = ssub.s32 256, 256
      %11 = vsyncadd [#allocation3], %s10
      %s13 = sshll.u32 [#allocation2], 4
      %s14 = int_to_ptr.vmem [resolvable:$true] %s13
      %16 = dma.hbm_to_vmem [thread:$0]  %s0, 256, %s14, [#allocation3]
    $region5: #{tpu_custom_call.1} parent=1 // pred_fallthru
      _
    // Predicated region
    $region6: #{tpu_custom_call.1} parent=1 // pred_check
      _
    $region7: #{tpu_custom_call.1} parent=1 // pred_check_branch
      %18 = sbr.rel (0) target = $region9
    $region8: #{tpu_custom_call.1} parent=1 // pred_region
      %19 = dma.done [#allocation3], 256
    $region9: #{tpu_custom_call.1} parent=1 // pred_fallthru
      _
    %v20 = vld [vmem:[#allocation2] sm:$0xff]
    %v21 = vld [vmem:[#allocation2 + $0x8] sm:$0xff]
    %v22 = vadd.f32 %v20, %v21
    %23 = vadd.xlane.f32.xlu0 %v22
    %v24 = vpop.xlane.xlu0 %23
    %v25 = vmul.f32 %v24, 0.00390625
    %vm26 = vcmask 7168
    %27 = vst.msk [vmem:[%s1] sm:$0xff] %vm26, %v25
    // Predicated region
    $region10: #{tpu_custom_call.1} parent=1 // pred_check
      _
    $region11: #{tpu_custom_call.1} parent=1 // pred_check_branch
      %29 = sbr.rel (0) target = $region13
    $region12: #{tpu_custom_call.1} parent=1 // pred_region
      _
    $region13: #{tpu_custom_call.1} parent=1 // pred_fallthru
      _
    // Predicated region
    $region14: #{tpu_custom_call.1} parent=1 // pred_check
      _
    $region15: #{tpu_custom_call.1} parent=1 // pred_check_branch
      %31 = sbr.rel (0) target = $region17
    $region16: #{tpu_custom_call.1} parent=1 // pred_region
      _
    $region17: #{tpu_custom_call.1} parent=1 // pred_fallthru
      _
    %32 = vsyncpa [#allocation3], 1

</llo_original>
